<compile_context>
chip_gen: v7x
topology: tpu7x:2x2x1
jax: 0.10.0
libtpu: 0.0.40
codegen_flags: <defaults>
</compile_context>

<pallas_src>
import functools

import jax
import jax.numpy as jnp
from jax.experimental import pallas as pl
from jax.experimental.pallas import tpu as pltpu


def _round_up(n, m):
    return ((n + m - 1) // m) * m


def _encoder_kernel(x_ref, w1_ref, b1_ref, w2_ref, b2_ref, wmv_ref, bmv_ref,
                    out_ref):
    """One (TB, D) batch tile of the full Encoder forward pass."""
    x = x_ref[...]
    w1 = w1_ref[...]
    b1 = b1_ref[...]

    # x = FC_input(x)
    y1 = jnp.dot(x, w1, preferred_element_type=jnp.float32) + b1
    # h_ = LeakyReLU(FC_input(x))   (FC_input applied a second time — as in torch)
    y2 = jnp.dot(y1.astype(w1.dtype), w1, preferred_element_type=jnp.float32) + b1
    h = jnp.where(y2 > 0, y2, 0.2 * y2)

    # h_ = LeakyReLU(FC_input2(h_))
    z = jnp.dot(h.astype(w2_ref.dtype), w2_ref[...],
                preferred_element_type=jnp.float32) + b2_ref[...]
    h2 = jnp.where(z > 0, z, 0.2 * z)

    # Fused [mean | log_var] head: single lane-dense matmul.
    out = jnp.dot(h2.astype(wmv_ref.dtype), wmv_ref[...],
                  preferred_element_type=jnp.float32) + bmv_ref[...]
    out_ref[...] = out.astype(out_ref.dtype)


def prepare_encoder_params(params, compute_dtype=jnp.float32):
    """One-time parameter packing (pre-transpose, fuse heads, pad to 128 lanes).

    `params` uses PyTorch-convention shapes:
       W1 (hidden, input), b1 (hidden,)
       W2 (hidden, hidden), b2 (hidden,)
       Wm (latent, hidden), bm (latent,)
       Wv (latent, hidden), bv (latent,)

    Returns (arrays, meta):
       arrays : pytree of jnp arrays only (safe to pass through jax.jit)
       meta   : plain-Python metadata kept outside the jit boundary
    """
    hidden_dim, input_dim = params["W1"].shape
    latent_dim = params["Wm"].shape[0]
    assert input_dim == hidden_dim, (
        "Encoder.forward applies FC_input twice; needs input_dim == hidden_dim")

    dp = _round_up(hidden_dim, 128)          # padded feature/hidden dim
    l2 = 2 * latent_dim
    l2p = _round_up(l2, 128)                 # padded fused head dim

    def pad2(a, rows, cols):
        return jnp.pad(a, ((0, rows - a.shape[0]), (0, cols - a.shape[1])))

    # Pre-transpose to (in, out); pad with zeros; fuse mean/log_var heads.
    w1 = pad2(params["W1"].T, dp, dp).astype(compute_dtype)
    w2 = pad2(params["W2"].T, dp, dp).astype(compute_dtype)
    wmv = pad2(jnp.concatenate([params["Wm"].T, params["Wv"].T], axis=1), dp, l2p
               ).astype(compute_dtype)

    def padb(b, cols):
        return jnp.pad(b.reshape(1, -1), ((0, 0), (0, cols - b.shape[0]))
                       ).astype(jnp.float32)

    arrays = {
        "w1": w1, "b1": padb(params["b1"], dp),
        "w2": w2, "b2": padb(params["b2"], dp),
        "wmv": wmv, "bmv": padb(jnp.concatenate([params["bm"], params["bv"]]), l2p),
    }
    meta = {
        "input_dim": input_dim,
        "hidden_dim": hidden_dim,
        "latent_dim": latent_dim,
        "dp": dp,
        "l2p": l2p,
        "compute_dtype": compute_dtype,
    }
    return arrays, meta


@functools.partial(jax.jit, static_argnames=("tb",))
def _encoder_call(x_p, arrays, tb):
    bp, dp = x_p.shape
    l2p = arrays["wmv"].shape[1]

    def wspec(shape):
        return pl.BlockSpec(shape, lambda i: (0, 0))  # VMEM-resident weights

    out = pl.pallas_call(
        _encoder_kernel,
        out_shape=jax.ShapeDtypeStruct((bp, l2p), jnp.float32),
        grid=(bp // tb,),
        in_specs=[
            pl.BlockSpec((tb, dp), lambda i: (i, 0)),            # x tile
            wspec(arrays["w1"].shape), wspec(arrays["b1"].shape),
            wspec(arrays["w2"].shape), wspec(arrays["b2"].shape),
            wspec(arrays["wmv"].shape), wspec(arrays["bmv"].shape),
        ],
        out_specs=pl.BlockSpec((tb, l2p), lambda i: (i, 0)),
        compiler_params=pltpu.CompilerParams(
            dimension_semantics=("parallel",)),                  # megacore on v7x
    )(x_p, arrays["w1"], arrays["b1"], arrays["w2"], arrays["b2"],
      arrays["wmv"], arrays["bmv"])
    return out


def encoder_forward(x, arrays, meta, tb=None):
    """Runs the Encoder forward.  `arrays`/`meta` come from prepare_encoder_params."""
    B, input_dim = x.shape
    assert input_dim == meta["input_dim"]
    dp = meta["dp"]
    latent_dim = meta["latent_dim"]

    # Batch tile: multiple of 8 (f32 sublane), capped at 512 rows.
    if tb is None:
        tb = max(8, min(512, _round_up(B, 8)))
    bp = _round_up(B, tb)

    # Pad batch rows and feature lanes with zeros (inert through the network).
    x_p = jnp.pad(x.astype(meta["compute_dtype"]),
                  ((0, bp - B), (0, dp - input_dim)))

    out = _encoder_call(x_p, arrays, tb)

    mean = out[:B, :latent_dim].astype(x.dtype)
    log_var = out[:B, latent_dim:2 * latent_dim].astype(x.dtype)
    return mean, log_var


def _reference_forward(x, params):
    """Pure-JAX reference mirroring the PyTorch forward exactly."""
    def lin(v, W, b):
        return v @ W.T + b

    def lrelu(v):
        return jnp.where(v > 0, v, 0.2 * v)

    x1 = lin(x, params["W1"], params["b1"])
    h_ = lrelu(lin(x1, params["W1"], params["b1"]))
    h_ = lrelu(lin(h_, params["W2"], params["b2"]))
    mean = lin(h_, params["Wm"], params["bm"])
    log_var = lin(h_, params["Wv"], params["bv"])
    return mean, log_var


if __name__ == "__main__":
    # Small shapes consistent with the module (input_dim == hidden_dim; see note).
    batch, input_dim, hidden_dim, latent_dim = 8, 32, 32, 16

    key = jax.random.PRNGKey(0)
    ks = jax.random.split(key, 9)

    params = {
        "W1": jax.random.normal(ks[0], (hidden_dim, input_dim), jnp.float32) * 0.1,
        "b1": jax.random.normal(ks[1], (hidden_dim,), jnp.float32) * 0.1,
        "W2": jax.random.normal(ks[2], (hidden_dim, hidden_dim), jnp.float32) * 0.1,
        "b2": jax.random.normal(ks[3], (hidden_dim,), jnp.float32) * 0.1,
        "Wm": jax.random.normal(ks[4], (latent_dim, hidden_dim), jnp.float32) * 0.1,
        "bm": jax.random.normal(ks[5], (latent_dim,), jnp.float32) * 0.1,
        "Wv": jax.random.normal(ks[6], (latent_dim, hidden_dim), jnp.float32) * 0.1,
        "bv": jax.random.normal(ks[7], (latent_dim,), jnp.float32) * 0.1,
    }
    x = jax.random.normal(ks[8], (batch, input_dim), jnp.float32)

    # One-time parameter packing (transpose + fuse + pad); reuse across calls.
    # For v6e/v7x peak MXU throughput pass compute_dtype=jnp.bfloat16 (relax tol).
    arrays, meta = prepare_encoder_params(params, compute_dtype=jnp.float32)

    mean, log_var = encoder_forward(x, arrays, meta)
    jax.block_until_ready((mean, log_var))

    ref_mean, ref_log_var = _reference_forward(x, params)
    assert jnp.allclose(mean, ref_mean, atol=1e-5, rtol=1e-5)
    assert jnp.allclose(log_var, ref_log_var, atol=1e-5, rtol=1e-5)

    print("KERNEL_OK")
</pallas_src>

<mosaic_0001>
module attributes {stable_mosaic.version = 11 : i64} {
  func.func @_encoder_kernel(%arg0: i32, %arg1: memref<8x128xf32, #tpu.memory_space<vmem>>, %arg2: memref<128x128xf32, #tpu.memory_space<vmem>>, %arg3: memref<1x128xf32, #tpu.memory_space<vmem>>, %arg4: memref<128x128xf32, #tpu.memory_space<vmem>>, %arg5: memref<1x128xf32, #tpu.memory_space<vmem>>, %arg6: memref<128x128xf32, #tpu.memory_space<vmem>>, %arg7: memref<1x128xf32, #tpu.memory_space<vmem>>, %arg8: memref<8x128xf32, #tpu.memory_space<vmem>>) attributes {dimension_semantics = [#tpu.dimension_semantics<parallel>], iteration_bounds = array<i64: 1>, scalar_prefetch = 0 : i64, scratch_operands = 0 : i64, tpu.core_type = #tpu.core_type<tc>, window_params = [{transform_indices = @transform_0, window_bounds = array<i64: 8, 128>}, {pipeline_mode = #tpu.pipeline_mode<synchronous>, transform_indices = @transform_1, window_bounds = array<i64: 128, 128>}, {pipeline_mode = #tpu.pipeline_mode<synchronous>, transform_indices = @transform_2, window_bounds = array<i64: 1, 128>}, {pipeline_mode = #tpu.pipeline_mode<synchronous>, transform_indices = @transform_3, window_bounds = array<i64: 128, 128>}, {pipeline_mode = #tpu.pipeline_mode<synchronous>, transform_indices = @transform_4, window_bounds = array<i64: 1, 128>}, {pipeline_mode = #tpu.pipeline_mode<synchronous>, transform_indices = @transform_5, window_bounds = array<i64: 128, 128>}, {pipeline_mode = #tpu.pipeline_mode<synchronous>, transform_indices = @transform_6, window_bounds = array<i64: 1, 128>}, {transform_indices = @transform_7, window_bounds = array<i64: 8, 128>}]} {
    %c0 = arith.constant 0 : index
    %c0_0 = arith.constant 0 : index
    %0 = vector.load %arg1[%c0, %c0_0] : memref<8x128xf32, #tpu.memory_space<vmem>>, vector<8x128xf32>
    %c0_1 = arith.constant 0 : index
    %c0_2 = arith.constant 0 : index
    %1 = vector.load %arg2[%c0_1, %c0_2] : memref<128x128xf32, #tpu.memory_space<vmem>>, vector<128x128xf32>
    %c0_3 = arith.constant 0 : index
    %c0_4 = arith.constant 0 : index
    %2 = vector.load %arg3[%c0_3, %c0_4] : memref<1x128xf32, #tpu.memory_space<vmem>>, vector<1x128xf32>
    %cst = arith.constant dense<0.000000e+00> : vector<8x128xf32>
    %3 = tpu.matmul %0, %1, %cst {dimension_numbers = #tpu.dot_dimension_numbers<[1], [0], [0], [1], [0, 0, 1, 1], [], []>} : vector<8x128xf32>, vector<128x128xf32>, vector<8x128xf32> -> vector<8x128xf32>
    %4 = vector.broadcast %2 : vector<1x128xf32> to vector<8x128xf32>
    %5 = arith.addf %3, %4 : vector<8x128xf32>
    %cst_5 = arith.constant dense<0.000000e+00> : vector<8x128xf32>
    %6 = tpu.matmul %5, %1, %cst_5 {dimension_numbers = #tpu.dot_dimension_numbers<[1], [0], [0], [1], [0, 0, 1, 1], [], []>} : vector<8x128xf32>, vector<128x128xf32>, vector<8x128xf32> -> vector<8x128xf32>
    %7 = vector.broadcast %2 : vector<1x128xf32> to vector<8x128xf32>
    %8 = arith.addf %6, %7 : vector<8x128xf32>
    %cst_6 = arith.constant 0.000000e+00 : f32
    %9 = vector.broadcast %cst_6 : f32 to vector<8x128xf32>
    %10 = arith.cmpf ogt, %8, %9 : vector<8x128xf32>
    %cst_7 = arith.constant 2.000000e-01 : f32
    %11 = vector.broadcast %cst_7 : f32 to vector<8x128xf32>
    %12 = arith.mulf %11, %8 : vector<8x128xf32>
    %13 = arith.select %10, %8, %12 : vector<8x128xi1>, vector<8x128xf32>
    %c0_8 = arith.constant 0 : index
    %c0_9 = arith.constant 0 : index
    %14 = vector.load %arg4[%c0_8, %c0_9] : memref<128x128xf32, #tpu.memory_space<vmem>>, vector<128x128xf32>
    %cst_10 = arith.constant dense<0.000000e+00> : vector<8x128xf32>
    %15 = tpu.matmul %13, %14, %cst_10 {dimension_numbers = #tpu.dot_dimension_numbers<[1], [0], [0], [1], [0, 0, 1, 1], [], []>} : vector<8x128xf32>, vector<128x128xf32>, vector<8x128xf32> -> vector<8x128xf32>
    %c0_11 = arith.constant 0 : index
    %c0_12 = arith.constant 0 : index
    %16 = vector.load %arg5[%c0_11, %c0_12] : memref<1x128xf32, #tpu.memory_space<vmem>>, vector<1x128xf32>
    %17 = vector.broadcast %16 : vector<1x128xf32> to vector<8x128xf32>
    %18 = arith.addf %15, %17 : vector<8x128xf32>
    %cst_13 = arith.constant 0.000000e+00 : f32
    %19 = vector.broadcast %cst_13 : f32 to vector<8x128xf32>
    %20 = arith.cmpf ogt, %18, %19 : vector<8x128xf32>
    %cst_14 = arith.constant 2.000000e-01 : f32
    %21 = vector.broadcast %cst_14 : f32 to vector<8x128xf32>
    %22 = arith.mulf %21, %18 : vector<8x128xf32>
    %23 = arith.select %20, %18, %22 : vector<8x128xi1>, vector<8x128xf32>
    %c0_15 = arith.constant 0 : index
    %c0_16 = arith.constant 0 : index
    %24 = vector.load %arg6[%c0_15, %c0_16] : memref<128x128xf32, #tpu.memory_space<vmem>>, vector<128x128xf32>
    %cst_17 = arith.constant dense<0.000000e+00> : vector<8x128xf32>
    %25 = tpu.matmul %23, %24, %cst_17 {dimension_numbers = #tpu.dot_dimension_numbers<[1], [0], [0], [1], [0, 0, 1, 1], [], []>} : vector<8x128xf32>, vector<128x128xf32>, vector<8x128xf32> -> vector<8x128xf32>
    %c0_18 = arith.constant 0 : index
    %c0_19 = arith.constant 0 : index
    %26 = vector.load %arg7[%c0_18, %c0_19] : memref<1x128xf32, #tpu.memory_space<vmem>>, vector<1x128xf32>
    %27 = vector.broadcast %26 : vector<1x128xf32> to vector<8x128xf32>
    %28 = arith.addf %25, %27 : vector<8x128xf32>
    %c0_20 = arith.constant 0 : index
    %c0_21 = arith.constant 0 : index
    %29 = vector.load %arg8[%c0_20, %c0_21] : memref<8x128xf32, #tpu.memory_space<vmem>>, vector<8x128xf32>
    tpu.vector_store %arg8[%c0_20, %c0_21], %28 {strides = array<i32>} : memref<8x128xf32, #tpu.memory_space<vmem>>, vector<8x128xf32>,
    return
  }
  func.func @transform_0(%arg0: i32) -> (i32, i32) {
    %c0_i32 = arith.constant 0 : i32
    %c0_i32_0 = arith.constant 0 : i32
    return %arg0, %c0_i32 : i32, i32
  }
  func.func @transform_1(%arg0: i32) -> (i32, i32) {
    %c0_i32 = arith.constant 0 : i32
    %c0_i32_0 = arith.constant 0 : i32
    %c0_i32_1 = arith.constant 0 : i32
    return %c0_i32, %c0_i32_0 : i32, i32
  }
  func.func @transform_2(%arg0: i32) -> (i32, i32) {
    %c0_i32 = arith.constant 0 : i32
    %c0_i32_0 = arith.constant 0 : i32
    %c0_i32_1 = arith.constant 0 : i32
    return %c0_i32, %c0_i32_0 : i32, i32
  }
  func.func @transform_3(%arg0: i32) -> (i32, i32) {
    %c0_i32 = arith.constant 0 : i32
    %c0_i32_0 = arith.constant 0 : i32
    %c0_i32_1 = arith.constant 0 : i32
    return %c0_i32, %c0_i32_0 : i32, i32
  }
  func.func @transform_4(%arg0: i32) -> (i32, i32) {
    %c0_i32 = arith.constant 0 : i32
    %c0_i32_0 = arith.constant 0 : i32
    %c0_i32_1 = arith.constant 0 : i32
    return %c0_i32, %c0_i32_0 : i32, i32
  }
  func.func @transform_5(%arg0: i32) -> (i32, i32) {
    %c0_i32 = arith.constant 0 : i32
    %c0_i32_0 = arith.constant 0 : i32
    %c0_i32_1 = arith.constant 0 : i32
    return %c0_i32, %c0_i32_0 : i32, i32
  }
  func.func @transform_6(%arg0: i32) -> (i32, i32) {
    %c0_i32 = arith.constant 0 : i32
    %c0_i32_0 = arith.constant 0 : i32
    %c0_i32_1 = arith.constant 0 : i32
    return %c0_i32, %c0_i32_0 : i32, i32
  }
  func.func @transform_7(%arg0: i32) -> (i32, i32) {
    %c0_i32 = arith.constant 0 : i32
    %c0_i32_0 = arith.constant 0 : i32
    return %arg0, %c0_i32 : i32, i32
  }
}

</mosaic_0001>

<llo_original>
// kernel: _encoder_call.1
$region0: #{_encoder_call.1}
  #allocation0 [shape = 'u32[]', space=smem, size = 0x4, offset = 0x4, fixed_abs, tag = 'smem constant byte address 0x4 - core index']
  #allocation1 [shape = 'u32[144,128]{1,0:T(1,128)}', space=vmem, size = 0x12000, scoped, tag = 'internal scratch']
  %s0 = inlined_call_operand.hbm [shape: f32[8,128], index: 0, kind: input, shape index: {}]
  %s1 = inlined_call_operand.hbm [shape: f32[128,128], index: 1, kind: input, shape index: {}]
  %s2 = inlined_call_operand.vmem [shape: f32[1,128], index: 2, kind: input, shape index: {}]
  %s3 = inlined_call_operand.hbm [shape: f32[128,128], index: 3, kind: input, shape index: {}]
  %s4 = inlined_call_operand.vmem [shape: f32[1,128], index: 4, kind: input, shape index: {}]
  %s5 = inlined_call_operand.hbm [shape: f32[128,128], index: 5, kind: input, shape index: {}]
  %s6 = inlined_call_operand.vmem [shape: f32[1,128], index: 6, kind: input, shape index: {}]
  %s7 = inlined_call_operand.hbm [shape: f32[8,128], index: 7, kind: output, shape index: {}]
  %s8 = sld [smem:[#allocation0]]
  $region54: #{_encoder_call.1} parent=0
    _
  %s10 = ssub.s32 1, %s8
  %s11 = scalar_select 0, %s10, %s8
  $region1: #{_encoder_call.1} parent=0
    #allocation2 [shape = 'u8[4096]{0}', space=vmem, size = 0x1000, scoped, tag = 'input window, operand 0, single buffered']
    #allocation3 [shape = 's32[1]{0}', space=sflag, size = 0x4, scoped, tag = 'scoped memory for _encoder_call.1']
    #allocation4 [shape = 's32[1]{0}', space=sflag, size = 0x4, scoped, tag = 'scoped memory for _encoder_call.1']
    #allocation5 [shape = 'u8[65536]{0}', space=vmem, size = 0x10000, scoped, tag = 'input window, operand 1, single buffered']
    #allocation6 [shape = 's32[1]{0}', space=sflag, size = 0x4, scoped, tag = 'scoped memory for _encoder_call.1']
    #allocation7 [shape = 'u8[65536]{0}', space=vmem, size = 0x10000, scoped, tag = 'input window, operand 3, single buffered']
    #allocation8 [shape = 'u8[65536]{0}', space=vmem, size = 0x10000, scoped, tag = 'input window, operand 5, single buffered']
    #allocation9 [shape = 's32[1]{0}', space=sflag, size = 0x4, scoped, tag = 'scoped memory for _encoder_call.1']
    #allocation10 [shape = 'u8[4096]{0}', space=vmem, size = 0x1000, scoped, tag = 'output window, operand 0, single buffered']
    %12 = vsyncpa [#allocation3], 0
    %13 = vsyncpa [#allocation6], 0
    %14 = vsyncpa [#allocation9], 0
    %15 = vsyncpa [#allocation4], 0
    // Predicated region
    $region2: #{_encoder_call.1} parent=1 // pred_check
      _
    $region3: #{_encoder_call.1} parent=1 // pred_check_branch
      %17 = sbr.rel (0) target = $region5
    $region4: #{_encoder_call.1} parent=1 // pred_region
      %s19 = ssub.s32 128, 128
      %20 = vsyncadd [#allocation3], %s19
      %s22 = sshll.u32 [#allocation2], 4
      %s23 = int_to_ptr.vmem [resolvable:$true] %s22
      %25 = dma.hbm_to_vmem [thread:$0]  %s0, 128, %s23, [#allocation3]
    $region5: #{_encoder_call.1} parent=1 // pred_fallthru
      _
    // Predicated region
    $region6: #{_encoder_call.1} parent=1 // pred_check
      _
    $region7: #{_encoder_call.1} parent=1 // pred_check_branch
      %27 = sbr.rel (0) target = $region9
    $region8: #{_encoder_call.1} parent=1 // pred_region
      %s29 = ssub.s32 2048, 2048
      %30 = vsyncadd [#allocation6], %s29
      %s31 = sshll.u32 [#allocation5], 4
      %s32 = int_to_ptr.vmem [resolvable:$true] %s31
      %37 = dma.hbm_to_vmem [thread:$0]  %s1, 2048, %s32, [#allocation6], 128, 128, 8
    $region9: #{_encoder_call.1} parent=1 // pred_fallthru
      _
    // Predicated region
    $region10: #{_encoder_call.1} parent=1 // pred_check
      _
    $region11: #{_encoder_call.1} parent=1 // pred_check_branch
      %39 = sbr.rel (0) target = $region13
    $region12: #{_encoder_call.1} parent=1 // pred_region
      _
    $region13: #{_encoder_call.1} parent=1 // pred_fallthru
      _
    // Predicated region
    $region14: #{_encoder_call.1} parent=1 // pred_check
      _
    $region15: #{_encoder_call.1} parent=1 // pred_check_branch
      %41 = sbr.rel (0) target = $region17
    $region16: #{_encoder_call.1} parent=1 // pred_region
      %s43 = ssub.s32 2048, 2048
      %44 = vsyncadd [#allocation6], %s43
      %s45 = sshll.u32 [#allocation7], 4
      %s46 = int_to_ptr.vmem [resolvable:$true] %s45
      %51 = dma.hbm_to_vmem [thread:$0]  %s3, 2048, %s46, [#allocation6], 128, 128, 8
    $region17: #{_encoder_call.1} parent=1 // pred_fallthru
      _
    // Predicated region
    $region18: #{_encoder_call.1} parent=1 // pred_check
      _
    $region19: #{_encoder_call.1} parent=1 // pred_check_branch
      %53 = sbr.rel (0) target = $region21
    $region20: #{_encoder_call.1} parent=1 // pred_region
      _
    $region21: #{_encoder_call.1} parent=1 // pred_fallthru
      _
    // Predicated region
    $region22: #{_encoder_call.1} parent=1 // pred_check
      _
    $region23: #{_encoder_call.1} parent=1 // pred_check_branch
      %55 = sbr.rel (0) target = $region25
    $region24: #{_encoder_call.1} parent=1 // pred_region
      %s57 = ssub.s32 2048, 2048
      %58 = vsyncadd [#allocation9], %s57
      %s59 = sshll.u32 [#allocation8], 4
      %s60 = int_to_ptr.vmem [resolvable:$true] %s59
      %65 = dma.hbm_to_vmem [thread:$0]  %s5, 2048, %s60, [#allocation9], 128, 128, 8
    $region25: #{_encoder_call.1} parent=1 // pred_fallthru
      _
    // Predicated region
    $region26: #{_encoder_call.1} parent=1 // pred_check
      _
    $region27: #{_encoder_call.1} parent=1 // pred_check_branch
      %67 = sbr.rel (0) target = $region29
    $region28: #{_encoder_call.1} parent=1 // pred_region
      _
    $region29: #{_encoder_call.1} parent=1 // pred_fallthru
      _
    // Predicated region
    $region30: #{_encoder_call.1} parent=1 // pred_check
      _
    $region31: #{_encoder_call.1} parent=1 // pred_check_branch
      %69 = sbr.rel (0) target = $region33
    $region32: #{_encoder_call.1} parent=1 // pred_region
      %70 = dma.done [#allocation3], 128
    $region33: #{_encoder_call.1} parent=1 // pred_fallthru
      _
    // Predicated region
    $region34: #{_encoder_call.1} parent=1 // pred_check
      _
    $region35: #{_encoder_call.1} parent=1 // pred_check_branch
      %72 = sbr.rel (0) target = $region37
    $region36: #{_encoder_call.1} parent=1 // pred_region
      %73 = dma.done [#allocation6], 2048
    $region37: #{_encoder_call.1} parent=1 // pred_fallthru
      _
    // Predicated region
    $region38: #{_encoder_call.1} parent=1 // pred_check
      _
    $region39: #{_encoder_call.1} parent=1 // pred_check_branch
      %75 = sbr.rel (0) target = $region41
    $region40: #{_encoder_call.1} parent=1 // pred_region
      %76 = dma.done [#allocation6], 2048
    $region41: #{_encoder_call.1} parent=1 // pred_fallthru
      _
    // Predicated region
    $region42: #{_encoder_call.1} parent=1 // pred_check
      _
    $region43: #{_encoder_call.1} parent=1 // pred_check_branch
      %78 = sbr.rel (0) target = $region45
    $region44: #{_encoder_call.1} parent=1 // pred_region
      %79 = dma.done [#allocation9], 2048
    $region45: #{_encoder_call.1} parent=1 // pred_fallthru
      _
    %v80 = vld [vmem:[#allocation2] sm:$0xff]
    %v81 = vld [vmem:[#allocation5] sm:$0xff]
    %v82 = vld [vmem:[#allocation5 + $0x8] sm:$0xff]
    %v83 = vld [vmem:[#allocation5 + $0x10] sm:$0xff]
    %v84 = vld [vmem:[#allocation5 + $0x18] sm:$0xff]
    %v85 = vld [vmem:[#allocation5 + $0x20] sm:$0xff]
    %v86 = vld [vmem:[#allocation5 + $0x28] sm:$0xff]
    %v87 = vld [vmem:[#allocation5 + $0x30] sm:$0xff]
    %v88 = vld [vmem:[#allocation5 + $0x38] sm:$0xff]
    %v89 = vld [vmem:[#allocation5 + $0x40] sm:$0xff]
    %v90 = vld [vmem:[#allocation5 + $0x48] sm:$0xff]
    %v91 = vld [vmem:[#allocation5 + $0x50] sm:$0xff]
    %v92 = vld [vmem:[#allocation5 + $0x58] sm:$0xff]
    %v93 = vld [vmem:[#allocation5 + $0x60] sm:$0xff]
    %v94 = vld [vmem:[#allocation5 + $0x68] sm:$0xff]
    %v95 = vld [vmem:[#allocation5 + $0x70] sm:$0xff]
    %v96 = vld [vmem:[#allocation5 + $0x78] sm:$0xff]
    %v97 = vld [vmem:[%s2] sm:$0x1]
    %v99 = vlaneseq
    %v100 = vshrl.u32 %v99, 7
    %v101 = vsub.s32 0, %v100
    %v102 = vrot.slane %v97, %v101
    %104 = vmatprep.subr.mxu0 0.0
    %105 = vmatpush1.msra.mxu0 %v81
    %106 = vmatprep.subr.mxu0 0.0
    %107 = vmatpush1.msra.mxu0 %v82
    %108 = vmatprep.subr.mxu0 0.0
    %109 = vmatpush1.msra.mxu0 %v83
    %110 = vmatprep.subr.mxu0 0.0
    %111 = vmatpush1.msra.mxu0 %v84
    %112 = vmatprep.subr.mxu0 0.0
    %113 = vmatpush1.msra.mxu0 %v85
    %114 = vmatprep.subr.mxu0 0.0
    %115 = vmatpush1.msra.mxu0 %v86
    %116 = vmatprep.subr.mxu0 0.0
    %117 = vmatpush1.msra.mxu0 %v87
    %118 = vmatprep.subr.mxu0 0.0
    %119 = vmatpush1.msra.mxu0 %v88
    %120 = vmatprep.subr.mxu0 0.0
    %121 = vmatpush1.msra.mxu0 %v89
    %122 = vmatprep.subr.mxu0 0.0
    %123 = vmatpush1.msra.mxu0 %v90
    %124 = vmatprep.subr.mxu0 0.0
    %125 = vmatpush1.msra.mxu0 %v91
    %126 = vmatprep.subr.mxu0 0.0
    %127 = vmatpush1.msra.mxu0 %v92
    %128 = vmatprep.subr.mxu0 0.0
    %129 = vmatpush1.msra.mxu0 %v93
    %130 = vmatprep.subr.mxu0 0.0
    %131 = vmatpush1.msra.mxu0 %v94
    %132 = vmatprep.subr.mxu0 0.0
    %133 = vmatpush1.msra.mxu0 %v95
    %134 = vmatprep.subr.mxu0 0.0
    %135 = vmatpush1.msra.mxu0 %v96
    %136 = vmatprep.subr.mxu0 0.0
    %137 = vmatpush1.msra.mxu0 0.0
    %138 = vmatprep.subr.mxu0 0.0
    %139 = vmatpush1.msra.mxu0 0.0
    %140 = vmatprep.subr.mxu0 0.0
    %141 = vmatpush1.msra.mxu0 0.0
    %142 = vmatprep.subr.mxu0 0.0
    %143 = vmatpush1.msra.mxu0 0.0
    %144 = vmatprep.subr.mxu0 0.0
    %145 = vmatpush1.msra.mxu0 0.0
    %146 = vmatprep.subr.mxu0 0.0
    %147 = vmatpush1.msra.mxu0 0.0
    %148 = vmatprep.subr.mxu0 0.0
    %149 = vmatpush1.msra.mxu0 0.0
    %150 = vmatprep.subr.mxu0 0.0
    %151 = vmatpush1.msra.mxu0 0.0
    %152 = vmatprep.subr.mxu0 0.0
    %153 = vmatpush1.msra.mxu0 0.0
    %154 = vmatprep.subr.mxu0 0.0
    %155 = vmatpush1.msra.mxu0 0.0
    %156 = vmatprep.subr.mxu0 0.0
    %157 = vmatpush1.msra.mxu0 0.0
    %158 = vmatprep.subr.mxu0 0.0
    %159 = vmatpush1.msra.mxu0 0.0
    %160 = vmatprep.subr.mxu0 0.0
    %161 = vmatpush1.msra.mxu0 0.0
    %162 = vmatprep.subr.mxu0 0.0
    %163 = vmatpush1.msra.mxu0 0.0
    %164 = vmatprep.subr.mxu0 0.0
    %165 = vmatpush1.msra.mxu0 0.0
    %166 = vmatprep.subr.mxu0 0.0
    %167 = vmatpush1.msra.mxu0 0.0
    %168 = vmatprep.mubr.f32.mxu0 0.0
    %169 = vmatmul.mubr.f32.gmra.mrb[0].mxu0 %v80
    %v170 = vpop.f32.mrb[0].mxu0
    %v171 = vadd.f32 %v102, %v170
    %v172 = vpop.f32.mrb[0].mxu0
    %173 = vdwg.mxu0
    %174 = vmatprep.subr.mxu0 0.0
    %175 = vmatpush1.msra.mxu0 %v81
    %176 = vmatprep.subr.mxu0 0.0
    %177 = vmatpush1.msra.mxu0 %v82
    %178 = vmatprep.subr.mxu0 0.0
    %179 = vmatpush1.msra.mxu0 %v83
    %180 = vmatprep.subr.mxu0 0.0
    %181 = vmatpush1.msra.mxu0 %v84
    %182 = vmatprep.subr.mxu0 0.0
    %183 = vmatpush1.msra.mxu0 %v85
    %184 = vmatprep.subr.mxu0 0.0
    %185 = vmatpush1.msra.mxu0 %v86
    %186 = vmatprep.subr.mxu0 0.0
    %187 = vmatpush1.msra.mxu0 %v87
    %188 = vmatprep.subr.mxu0 0.0
    %189 = vmatpush1.msra.mxu0 %v88
    %190 = vmatprep.subr.mxu0 0.0
    %191 = vmatpush1.msra.mxu0 %v89
    %192 = vmatprep.subr.mxu0 0.0
    %193 = vmatpush1.msra.mxu0 %v90
    %194 = vmatprep.subr.mxu0 0.0
    %195 = vmatpush1.msra.mxu0 %v91
    %196 = vmatprep.subr.mxu0 0.0
    %197 = vmatpush1.msra.mxu0 %v92
    %198 = vmatprep.subr.mxu0 0.0
    %199 = vmatpush1.msra.mxu0 %v93
    %200 = vmatprep.subr.mxu0 0.0
    %201 = vmatpush1.msra.mxu0 %v94
    %202 = vmatprep.subr.mxu0 0.0
    %203 = vmatpush1.msra.mxu0 %v95
    %204 = vmatprep.subr.mxu0 0.0
    %205 = vmatpush1.msra.mxu0 %v96
    %206 = vmatprep.subr.mxu0 0.0
    %207 = vmatpush1.msra.mxu0 0.0
    %208 = vmatprep.subr.mxu0 0.0
    %209 = vmatpush1.msra.mxu0 0.0
    %210 = vmatprep.subr.mxu0 0.0
    %211 = vmatpush1.msra.mxu0 0.0
    %212 = vmatprep.subr.mxu0 0.0
    %213 = vmatpush1.msra.mxu0 0.0
    %214 = vmatprep.subr.mxu0 0.0
    %215 = vmatpush1.msra.mxu0 0.0
    %216 = vmatprep.subr.mxu0 0.0
    %217 = vmatpush1.msra.mxu0 0.0
    %218 = vmatprep.subr.mxu0 0.0
    %219 = vmatpush1.msra.mxu0 0.0
    %220 = vmatprep.subr.mxu0 0.0
    %221 = vmatpush1.msra.mxu0 0.0
    %222 = vmatprep.subr.mxu0 0.0
    %223 = vmatpush1.msra.mxu0 0.0
    %224 = vmatprep.subr.mxu0 0.0
    %225 = vmatpush1.msra.mxu0 0.0
    %226 = vmatprep.subr.mxu0 0.0
    %227 = vmatpush1.msra.mxu0 0.0
    %228 = vmatprep.subr.mxu0 0.0
    %229 = vmatpush1.msra.mxu0 0.0
    %230 = vmatprep.subr.mxu0 0.0
    %231 = vmatpush1.msra.mxu0 0.0
    %232 = vmatprep.subr.mxu0 0.0
    %233 = vmatpush1.msra.mxu0 0.0
    %234 = vmatprep.subr.mxu0 0.0
    %235 = vmatpush1.msra.mxu0 0.0
    %236 = vmatprep.subr.mxu0 0.0
    %237 = vmatpush1.msra.mxu0 0.0
    %238 = vmatprep.mubr.f32.mxu0 0.0
    %239 = vmatmul.mubr.f32.gmra.mrb[0].mxu0 %v171
    %v240 = vpop.f32.mrb[0].mxu0
    %v241 = vadd.f32 %v102, %v240
    %v242 = vpop.f32.mrb[0].mxu0
    %243 = vdwg.mxu0
    %vm244 = vcmp.gt.f32.partialorder %v241, 0.0
    %v245 = vmul.f32 %v241, 0.2
    %v246 = vsel %vm244, %v241, %v245
    %v247 = vld [vmem:[#allocation7] sm:$0xff]
    %v248 = vld [vmem:[#allocation7 + $0x8] sm:$0xff]
    %v249 = vld [vmem:[#allocation7 + $0x10] sm:$0xff]
    %v250 = vld [vmem:[#allocation7 + $0x18] sm:$0xff]
    %v251 = vld [vmem:[#allocation7 + $0x20] sm:$0xff]
    %v252 = vld [vmem:[#allocation7 + $0x28] sm:$0xff]
    %v253 = vld [vmem:[#allocation7 + $0x30] sm:$0xff]
    %v254 = vld [vmem:[#allocation7 + $0x38] sm:$0xff]
    %v255 = vld [vmem:[#allocation7 + $0x40] sm:$0xff]
    %v256 = vld [vmem:[#allocation7 + $0x48] sm:$0xff]
    %v257 = vld [vmem:[#allocation7 + $0x50] sm:$0xff]
    %v258 = vld [vmem:[#allocation7 + $0x58] sm:$0xff]
    %v259 = vld [vmem:[#allocation7 + $0x60] sm:$0xff]
    %v260 = vld [vmem:[#allocation7 + $0x68] sm:$0xff]
    %v261 = vld [vmem:[#allocation7 + $0x70] sm:$0xff]
    %v262 = vld [vmem:[#allocation7 + $0x78] sm:$0xff]
    %v263 = vld [vmem:[%s4] sm:$0x1]
    %v265 = vlaneseq
    %v266 = vshrl.u32 %v265, 7
    %v267 = vsub.s32 0, %v266
    %v268 = vrot.slane %v263, %v267
    %270 = vmatprep.subr.mxu0 0.0
    %271 = vmatpush1.msra.mxu0 %v247
    %272 = vmatprep.subr.mxu0 0.0
    %273 = vmatpush1.msra.mxu0 %v248
    %274 = vmatprep.subr.mxu0 0.0
    %275 = vmatpush1.msra.mxu0 %v249
    %276 = vmatprep.subr.mxu0 0.0
    %277 = vmatpush1.msra.mxu0 %v250
    %278 = vmatprep.subr.mxu0 0.0
    %279 = vmatpush1.msra.mxu0 %v251
    %280 = vmatprep.subr.mxu0 0.0
    %281 = vmatpush1.msra.mxu0 %v252
    %282 = vmatprep.subr.mxu0 0.0
    %283 = vmatpush1.msra.mxu0 %v253
    %284 = vmatprep.subr.mxu0 0.0
    %285 = vmatpush1.msra.mxu0 %v254
    %286 = vmatprep.subr.mxu0 0.0
    %287 = vmatpush1.msra.mxu0 %v255
    %288 = vmatprep.subr.mxu0 0.0
    %289 = vmatpush1.msra.mxu0 %v256
    %290 = vmatprep.subr.mxu0 0.0
    %291 = vmatpush1.msra.mxu0 %v257
    %292 = vmatprep.subr.mxu0 0.0
    %293 = vmatpush1.msra.mxu0 %v258
    %294 = vmatprep.subr.mxu0 0.0
    %295 = vmatpush1.msra.mxu0 %v259
    %296 = vmatprep.subr.mxu0 0.0
    %297 = vmatpush1.msra.mxu0 %v260
    %298 = vmatprep.subr.mxu0 0.0
    %299 = vmatpush1.msra.mxu0 %v261
    %300 = vmatprep.subr.mxu0 0.0
    %301 = vmatpush1.msra.mxu0 %v262
    %302 = vmatprep.subr.mxu0 0.0
    %303 = vmatpush1.msra.mxu0 0.0
    %304 = vmatprep.subr.mxu0 0.0
    %305 = vmatpush1.msra.mxu0 0.0
    %306 = vmatprep.subr.mxu0 0.0
    %307 = vmatpush1.msra.mxu0 0.0
    %308 = vmatprep.subr.mxu0 0.0
    %309 = vmatpush1.msra.mxu0 0.0
    %310 = vmatprep.subr.mxu0 0.0
    %311 = vmatpush1.msra.mxu0 0.0
    %312 = vmatprep.subr.mxu0 0.0
    %313 = vmatpush1.msra.mxu0 0.0
    %314 = vmatprep.subr.mxu0 0.0
    %315 = vmatpush1.msra.mxu0 0.0
    %316 = vmatprep.subr.mxu0 0.0
    %317 = vmatpush1.msra.mxu0 0.0
    %318 = vmatprep.subr.mxu0 0.0
    %319 = vmatpush1.msra.mxu0 0.0
    %320 = vmatprep.subr.mxu0 0.0
    %321 = vmatpush1.msra.mxu0 0.0
    %322 = vmatprep.subr.mxu0 0.0
    %323 = vmatpush1.msra.mxu0 0.0
    %324 = vmatprep.subr.mxu0 0.0
    %325 = vmatpush1.msra.mxu0 0.0
    %326 = vmatprep.subr.mxu0 0.0
    %327 = vmatpush1.msra.mxu0 0.0
    %328 = vmatprep.subr.mxu0 0.0
    %329 = vmatpush1.msra.mxu0 0.0
    %330 = vmatprep.subr.mxu0 0.0
    %331 = vmatpush1.msra.mxu0 0.0
    %332 = vmatprep.subr.mxu0 0.0
    %333 = vmatpush1.msra.mxu0 0.0
    %334 = vmatprep.mubr.f32.mxu0 0.0
    %335 = vmatmul.mubr.f32.gmra.mrb[0].mxu0 %v246
    %v336 = vpop.f32.mrb[0].mxu0
    %v337 = vadd.f32 %v268, %v336
    %v338 = vpop.f32.mrb[0].mxu0
    %339 = vdwg.mxu0
    %vm340 = vcmp.gt.f32.partialorder %v337, 0.0
    %v341 = vmul.f32 %v337, 0.2
    %v342 = vsel %vm340, %v337, %v341
    %v343 = vld [vmem:[#allocation8] sm:$0xff]
    %v344 = vld [vmem:[#allocation8 + $0x8] sm:$0xff]
    %v345 = vld [vmem:[#allocation8 + $0x10] sm:$0xff]
    %v346 = vld [vmem:[#allocation8 + $0x18] sm:$0xff]
    %v347 = vld [vmem:[#allocation8 + $0x20] sm:$0xff]
    %v348 = vld [vmem:[#allocation8 + $0x28] sm:$0xff]
    %v349 = vld [vmem:[#allocation8 + $0x30] sm:$0xff]
    %v350 = vld [vmem:[#allocation8 + $0x38] sm:$0xff]
    %v351 = vld [vmem:[#allocation8 + $0x40] sm:$0xff]
    %v352 = vld [vmem:[#allocation8 + $0x48] sm:$0xff]
    %v353 = vld [vmem:[#allocation8 + $0x50] sm:$0xff]
    %v354 = vld [vmem:[#allocation8 + $0x58] sm:$0xff]
    %v355 = vld [vmem:[#allocation8 + $0x60] sm:$0xff]
    %v356 = vld [vmem:[#allocation8 + $0x68] sm:$0xff]
    %v357 = vld [vmem:[#allocation8 + $0x70] sm:$0xff]
    %v358 = vld [vmem:[#allocation8 + $0x78] sm:$0xff]
    %v359 = vld [vmem:[%s6] sm:$0x1]
    %v361 = vlaneseq
    %v362 = vshrl.u32 %v361, 7
    %v363 = vsub.s32 0, %v362
    %v364 = vrot.slane %v359, %v363
    %366 = vmatprep.subr.mxu0 0.0
    %367 = vmatpush1.msra.mxu0 %v343
    %368 = vmatprep.subr.mxu0 0.0
    %369 = vmatpush1.msra.mxu0 %v344
    %370 = vmatprep.subr.mxu0 0.0
    %371 = vmatpush1.msra.mxu0 %v345
    %372 = vmatprep.subr.mxu0 0.0
    %373 = vmatpush1.msra.mxu0 %v346
    %374 = vmatprep.subr.mxu0 0.0
    %375 = vmatpush1.msra.mxu0 %v347
    %376 = vmatprep.subr.mxu0 0.0
    %377 = vmatpush1.msra.mxu0 %v348
    %378 = vmatprep.subr.mxu0 0.0
    %379 = vmatpush1.msra.mxu0 %v349
    %380 = vmatprep.subr.mxu0 0.0
    %381 = vmatpush1.msra.mxu0 %v350
    %382 = vmatprep.subr.mxu0 0.0
    %383 = vmatpush1.msra.mxu0 %v351
    %384 = vmatprep.subr.mxu0 0.0
    %385 = vmatpush1.msra.mxu0 %v352
    %386 = vmatprep.subr.mxu0 0.0
    %387 = vmatpush1.msra.mxu0 %v353
    %388 = vmatprep.subr.mxu0 0.0
    %389 = vmatpush1.msra.mxu0 %v354
    %390 = vmatprep.subr.mxu0 0.0
    %391 = vmatpush1.msra.mxu0 %v355
    %392 = vmatprep.subr.mxu0 0.0
    %393 = vmatpush1.msra.mxu0 %v356
    %394 = vmatprep.subr.mxu0 0.0
    %395 = vmatpush1.msra.mxu0 %v357
    %396 = vmatprep.subr.mxu0 0.0
    %397 = vmatpush1.msra.mxu0 %v358
    %398 = vmatprep.subr.mxu0 0.0
    %399 = vmatpush1.msra.mxu0 0.0
    %400 = vmatprep.subr.mxu0 0.0
    %401 = vmatpush1.msra.mxu0 0.0
    %402 = vmatprep.subr.mxu0 0.0
    %403 = vmatpush1.msra.mxu0 0.0
    %404 = vmatprep.subr.mxu0 0.0
    %405 = vmatpush1.msra.mxu0 0.0
    %406 = vmatprep.subr.mxu0 0.0
    %407 = vmatpush1.msra.mxu0 0.0
    %408 = vmatprep.subr.mxu0 0.0
    %409 = vmatpush1.msra.mxu0 0.0
    %410 = vmatprep.subr.mxu0 0.0
    %411 = vmatpush1.msra.mxu0 0.0
    %412 = vmatprep.subr.mxu0 0.0
    %413 = vmatpush1.msra.mxu0 0.0
    %414 = vmatprep.subr.mxu0 0.0
    %415 = vmatpush1.msra.mxu0 0.0
    %416 = vmatprep.subr.mxu0 0.0
    %417 = vmatpush1.msra.mxu0 0.0
    %418 = vmatprep.subr.mxu0 0.0
    %419 = vmatpush1.msra.mxu0 0.0
    %420 = vmatprep.subr.mxu0 0.0
    %421 = vmatpush1.msra.mxu0 0.0
    %422 = vmatprep.subr.mxu0 0.0
    %423 = vmatpush1.msra.mxu0 0.0
    %424 = vmatprep.subr.mxu0 0.0
    %425 = vmatpush1.msra.mxu0 0.0
    %426 = vmatprep.subr.mxu0 0.0
    %427 = vmatpush1.msra.mxu0 0.0
    %428 = vmatprep.subr.mxu0 0.0
    %429 = vmatpush1.msra.mxu0 0.0
    %430 = vmatprep.mubr.f32.mxu0 0.0
    %431 = vmatmul.mubr.f32.gmra.mrb[0].mxu0 %v342
    %v432 = vpop.f32.mrb[0].mxu0
    %v433 = vadd.f32 %v364, %v432
    %v434 = vpop.f32.mrb[0].mxu0
    %435 = vdwg.mxu0
    %436 = vst [vmem:[#allocation10] sm:$0xff] %v433
    // Predicated region
    $region46: #{_encoder_call.1} parent=1 // pred_check
      _
    $region47: #{_encoder_call.1} parent=1 // pred_check_branch
      %438 = sbr.rel (0) target = $region49
    $region48: #{_encoder_call.1} parent=1 // pred_region
      %s440 = ssub.s32 128, 128
      %441 = vsyncadd [#allocation4], %s440
      %s443 = sshll.u32 [#allocation10], 4
      %s444 = int_to_ptr.vmem [resolvable:$true] %s443
      %446 = dma.vmem_to_hbm [thread:$0]  %s444, 128, %s7, [#allocation4]
    $region49: #{_encoder_call.1} parent=1 // pred_fallthru
      _
    // Predicated region
    $region50: #{_encoder_call.1} parent=1 // pred_check
      _
    $region51: #{_encoder_call.1} parent=1 // pred_check_branch
      %448 = sbr.rel (0) target = $region53
    $region52: #{_encoder_call.1} parent=1 // pred_region
      %449 = dma.done [#allocation4], 128
    $region53: #{_encoder_call.1} parent=1 // pred_fallthru
      _
    %450 = vsyncpa [#allocation3], 1
    %451 = vsyncpa [#allocation6], 1
    %452 = vsyncpa [#allocation9], 1
    %453 = vsyncpa [#allocation4], 1

</llo_original>
